<compile_context>
chip_gen: v6e
topology: v6e:2x2x1
jax: 0.10.0
libtpu: 0.0.40
codegen_flags: <defaults>
</compile_context>

<pallas_src>
import jax
import jax.numpy as jnp
import numpy as np
from jax.experimental import pallas as pl
from jax.experimental.pallas import tpu as pltpu


def word_attention_kernel(x_ref, w1_ref, b1_ref, w2_ref, b2_ref, mask_ref, out_ref):
    Bt, S, H = x_ref.shape
    P = w1_ref.shape[1]

    x = x_ref[...]                                                       # (Bt, S, H), native dtype

    # pre_pooling_linear: single tall MXU matmul, M = Bt*S, f32 accumulation.
    # (S is kept a multiple of 8 by the wrapper, so (Bt,S,H) <-> (Bt*S,H) is a layout no-op.)
    states = jnp.dot(x.reshape(Bt * S, H), w1_ref[...],
                     preferred_element_type=jnp.float32) + b1_ref[...]   # (Bt*S, P)

    # pooling_linear (output width 1): VPU multiply + lane (XLU) reduction instead of an
    # N=1 MXU matmul. Result is lane-major (Bt, S).
    t = jnp.tanh(states).reshape(Bt, S, P)                               # (Bt, S, P)
    scores = jnp.sum(t * w2_ref[...].reshape(1, 1, P), axis=-1) + b2_ref[...]   # (Bt, S)

    # weights.masked_fill(mask == 0, -1e9)  -- mask is an arbitrary 0/1 pattern.
    scores = jnp.where(mask_ref[...] == 0, jnp.float32(-1.0e9), scores)

    # softmax over the word axis (lane axis of the (Bt, S) tile).
    m = jnp.max(scores, axis=-1, keepdims=True)                          # (Bt, 1)
    e = jnp.exp(scores - m)
    denom = jnp.sum(e, axis=-1, keepdims=True)                           # (Bt, 1)
    # Exact reciprocal kept (approx=True trades ~1e-4 rel error for an EUP fast path).
    p = e * pl.reciprocal(denom, approx=False)                           # (Bt, S)

    # dropout(p) is identity in eval mode.
    # output = (x * weights.unsqueeze(2)).sum(dim=1)  -> lane-dense (Bt, H) store, f32 accum.
    acc = jnp.sum(x.astype(jnp.float32) * p[:, :, None], axis=1)         # (Bt, H)
    out_ref[...] = acc.astype(out_ref.dtype)


def word_attention(x, w1, b1, w2_row, b2, mask, *, block_b=8):
    """x: (B, S, H) f32/bf16, w1: (H, P), b1: (1, P), w2_row: (1, P), b2: (1, 1), mask: (B, S)."""
    B, S, H = x.shape
    P = w1.shape[1]

    # Keep S a multiple of 8 so the in-kernel (Bt,S,H)->(Bt*S,H) reshape is a layout no-op.
    S_pad = pl.cdiv(S, 8) * 8
    if S_pad != S:
        x = jnp.pad(x, ((0, 0), (0, S_pad - S), (0, 0)))
        mask = jnp.pad(mask, ((0, 0), (0, S_pad - S)))   # padded words masked -> zero softmax weight
        S = S_pad

    # Pad the batch to a multiple of the per-step batch tile. Padded rows get a zero mask,
    # which yields a uniform softmax over zero inputs -> zero output, sliced off below.
    Bt = max(1, min(block_b, B))
    B_pad = pl.cdiv(B, Bt) * Bt
    if B_pad != B:
        x = jnp.pad(x, ((0, B_pad - B), (0, 0), (0, 0)))
        mask = jnp.pad(mask, ((0, B_pad - B), (0, 0)))
    mask_i32 = mask.astype(jnp.int32)

    out = pl.pallas_call(
        word_attention_kernel,
        out_shape=jax.ShapeDtypeStruct((B_pad, H), x.dtype),
        grid_spec=pltpu.PrefetchScalarGridSpec(
            num_scalar_prefetch=0,
            grid=(B_pad // Bt,),
            in_specs=[
                pl.BlockSpec((Bt, S, H), lambda b: (b, 0, 0)),   # x tile: Bt batch rows
                pl.BlockSpec((H, P), lambda b: (0, 0)),          # W1 (full, resident)
                pl.BlockSpec((1, P), lambda b: (0, 0)),          # b1
                pl.BlockSpec((1, P), lambda b: (0, 0)),          # W2 as a (1, P) row
                pl.BlockSpec((1, 1), lambda b: (0, 0)),          # b2
                pl.BlockSpec((Bt, S), lambda b: (b, 0)),         # mask tile (lane-dense)
            ],
            out_specs=pl.BlockSpec((Bt, H), lambda b: (b, 0)),   # 2-D lane-dense output
        ),
        compiler_params=pltpu.CompilerParams(
            dimension_semantics=("parallel",),                   # shards across v7x dual TCs
            vmem_limit_bytes=64 * 1024 * 1024,
        ),
    )(x, w1, b1, w2_row, b2, mask_i32)
    return out[:B]


def reference(x, w1, b1, w2_row, b2, mask):
    """Pure-JAX mirror of the PyTorch forward (eval mode)."""
    states = x @ w1 + b1                                               # (B, S, P)
    weights = jnp.einsum('bsp,p->bs', jnp.tanh(states), w2_row[0]) + b2[0, 0]
    weights = jnp.where(mask == 0, -1.0e9, weights)
    weights = jax.nn.softmax(weights, axis=-1)
    return jnp.sum(x * weights[..., None], axis=1)                     # (B, H)


if __name__ == "__main__":
    # Small, module-consistent shapes:
    #   batch B=16, num_words S=8, word_hidden_dim H=32, pre_pooling_dim P=32, Bt=8 -> grid=(2,)
    B, S, H, P = 16, 8, 32, 32

    key = jax.random.PRNGKey(0)
    kx, kw1, kb1, kw2, kb2, kl = jax.random.split(key, 6)

    x = jax.random.normal(kx, (B, S, H), dtype=jnp.float32)

    # Deterministic synthetic parameters (torch.nn.Linear-like scale).
    w1 = jax.random.uniform(kw1, (H, P), jnp.float32, -1.0, 1.0) / jnp.sqrt(H)
    b1 = jax.random.uniform(kb1, (1, P), jnp.float32, -1.0, 1.0) / jnp.sqrt(H)
    w2 = jax.random.uniform(kw2, (1, P), jnp.float32, -1.0, 1.0) / jnp.sqrt(P)  # pooling weight row
    b2 = jax.random.uniform(kb2, (1, 1), jnp.float32, -1.0, 1.0) / jnp.sqrt(P)

    # Mask: variable valid lengths per row, plus one non-prefix hole to exercise arbitrary masks.
    lens = jax.random.randint(kl, (B,), 1, S + 1)
    mask = (jnp.arange(S)[None, :] < lens[:, None]).astype(jnp.float32)          # (B, S)
    mask = mask.at[0, 2].set(0.0)

    out = word_attention(x, w1, b1, w2, b2, mask, block_b=8)
    out = jax.block_until_ready(out)

    ref = reference(x, w1, b1, w2, b2, mask)
    np.testing.assert_allclose(np.asarray(out), np.asarray(ref), rtol=1e-5, atol=1e-5)

    print("KERNEL_OK")
</pallas_src>

<mosaic_0001>
module attributes {stable_mosaic.version = 11 : i64} {
  func.func @word_attention_kernel(%arg0: i32, %arg1: memref<8x8x32xf32, #tpu.memory_space<vmem>>, %arg2: memref<32x32xf32, #tpu.memory_space<vmem>>, %arg3: memref<1x32xf32, #tpu.memory_space<vmem>>, %arg4: memref<1x32xf32, #tpu.memory_space<vmem>>, %arg5: memref<1x1xf32, #tpu.memory_space<vmem>>, %arg6: memref<8x8xi32, #tpu.memory_space<vmem>>, %arg7: memref<8x32xf32, #tpu.memory_space<vmem>>) attributes {dimension_semantics = [#tpu.dimension_semantics<parallel>], iteration_bounds = array<i64: 2>, scalar_prefetch = 0 : i64, scratch_operands = 0 : i64, tpu.core_type = #tpu.core_type<tc>, window_params = [{transform_indices = @transform_0, window_bounds = array<i64: 8, 8, 32>}, {pipeline_mode = #tpu.pipeline_mode<synchronous>, transform_indices = @transform_1, window_bounds = array<i64: 32, 32>}, {pipeline_mode = #tpu.pipeline_mode<synchronous>, transform_indices = @transform_2, window_bounds = array<i64: 1, 32>}, {pipeline_mode = #tpu.pipeline_mode<synchronous>, transform_indices = @transform_3, window_bounds = array<i64: 1, 32>}, {pipeline_mode = #tpu.pipeline_mode<synchronous>, transform_indices = @transform_4, window_bounds = array<i64: 1, 1>}, {transform_indices = @transform_5, window_bounds = array<i64: 8, 8>}, {transform_indices = @transform_6, window_bounds = array<i64: 8, 32>}]} {
    %c0 = arith.constant 0 : index
    %c0_0 = arith.constant 0 : index
    %c0_1 = arith.constant 0 : index
    %0 = vector.load %arg1[%c0, %c0_0, %c0_1] : memref<8x8x32xf32, #tpu.memory_space<vmem>>, vector<8x8x32xf32>
    %1 = vector.shape_cast %0 : vector<8x8x32xf32> to vector<64x32xf32>
    %c0_2 = arith.constant 0 : index
    %c0_3 = arith.constant 0 : index
    %2 = vector.load %arg2[%c0_2, %c0_3] : memref<32x32xf32, #tpu.memory_space<vmem>>, vector<32x32xf32>
    %cst = arith.constant dense<0.000000e+00> : vector<64x32xf32>
    %3 = tpu.matmul %1, %2, %cst {dimension_numbers = #tpu.dot_dimension_numbers<[1], [0], [0], [1], [0, 0, 1, 1], [], []>} : vector<64x32xf32>, vector<32x32xf32>, vector<64x32xf32> -> vector<64x32xf32>
    %c0_4 = arith.constant 0 : index
    %c0_5 = arith.constant 0 : index
    %4 = vector.load %arg3[%c0_4, %c0_5] : memref<1x32xf32, #tpu.memory_space<vmem>>, vector<1x32xf32>
    %5 = vector.broadcast %4 : vector<1x32xf32> to vector<64x32xf32>
    %6 = arith.addf %3, %5 : vector<64x32xf32>
    %7 = math.tanh %6 : vector<64x32xf32>
    %8 = vector.shape_cast %7 : vector<64x32xf32> to vector<8x8x32xf32>
    %c0_6 = arith.constant 0 : index
    %c0_7 = arith.constant 0 : index
    %9 = vector.load %arg4[%c0_6, %c0_7] : memref<1x32xf32, #tpu.memory_space<vmem>>, vector<1x32xf32>
    %10 = vector.shape_cast %9 : vector<1x32xf32> to vector<1x1x32xf32>
    %11 = vector.broadcast %10 : vector<1x1x32xf32> to vector<8x8x32xf32>
    %12 = arith.mulf %8, %11 : vector<8x8x32xf32>
    %cst_8 = arith.constant dense<0.000000e+00> : vector<8x8xf32>
    %13 = vector.multi_reduction <add>, %12, %cst_8 [2] : vector<8x8x32xf32> to vector<8x8xf32>
    %c0_9 = arith.constant 0 : index
    %c0_10 = arith.constant 0 : index
    %14 = vector.load %arg5[%c0_9, %c0_10] : memref<1x1xf32, #tpu.memory_space<vmem>>, vector<1x1xf32>
    %15 = vector.broadcast %14 : vector<1x1xf32> to vector<8x8xf32>
    %16 = arith.addf %13, %15 : vector<8x8xf32>
    %c0_11 = arith.constant 0 : index
    %c0_12 = arith.constant 0 : index
    %17 = vector.load %arg6[%c0_11, %c0_12] : memref<8x8xi32, #tpu.memory_space<vmem>>, vector<8x8xi32>
    %c0_i32 = arith.constant 0 : i32
    %18 = vector.broadcast %c0_i32 : i32 to vector<8x8xi32>
    %19 = arith.cmpi eq, %17, %18 : vector<8x8xi32>
    %cst_13 = arith.constant -1.000000e+09 : f32
    %20 = vector.broadcast %cst_13 : f32 to vector<8x8xf32>
    %21 = arith.select %19, %20, %16 : vector<8x8xi1>, vector<8x8xf32>
    %cst_14 = arith.constant dense<0xFF800000> : vector<8xf32>
    %22 = vector.multi_reduction <maximumf>, %21, %cst_14 [1] : vector<8x8xf32> to vector<8xf32>
    %23 = vector.shape_cast %22 : vector<8xf32> to vector<8x1xf32>
    %24 = vector.broadcast %23 : vector<8x1xf32> to vector<8x8xf32>
    %25 = arith.subf %21, %24 : vector<8x8xf32>
    %26 = math.exp %25 : vector<8x8xf32>
    %cst_15 = arith.constant dense<0.000000e+00> : vector<8xf32>
    %27 = vector.multi_reduction <add>, %26, %cst_15 [1] : vector<8x8xf32> to vector<8xf32>
    %28 = vector.shape_cast %27 : vector<8xf32> to vector<8x1xf32>
    %29 = tpu.reciprocal %28 : vector<8x1xf32> -> vector<8x1xf32>
    %30 = vector.broadcast %29 : vector<8x1xf32> to vector<8x8xf32>
    %31 = arith.mulf %26, %30 : vector<8x8xf32>
    %32 = vector.shape_cast %31 : vector<8x8xf32> to vector<8x8x1xf32>
    %33 = vector.broadcast %32 : vector<8x8x1xf32> to vector<8x8x32xf32>
    %34 = arith.mulf %0, %33 : vector<8x8x32xf32>
    %cst_16 = arith.constant dense<0.000000e+00> : vector<8x32xf32>
    %35 = vector.multi_reduction <add>, %34, %cst_16 [1] : vector<8x8x32xf32> to vector<8x32xf32>
    %c0_17 = arith.constant 0 : index
    %c0_18 = arith.constant 0 : index
    %36 = vector.load %arg7[%c0_17, %c0_18] : memref<8x32xf32, #tpu.memory_space<vmem>>, vector<8x32xf32>
    tpu.vector_store %arg7[%c0_17, %c0_18], %35 {strides = array<i32>} : memref<8x32xf32, #tpu.memory_space<vmem>>, vector<8x32xf32>,
    return
  }
  func.func @transform_0(%arg0: i32) -> (i32, i32, i32) {
    %c0_i32 = arith.constant 0 : i32
    %c0_i32_0 = arith.constant 0 : i32
    %c0_i32_1 = arith.constant 0 : i32
    return %arg0, %c0_i32, %c0_i32_0 : i32, i32, i32
  }
  func.func @transform_1(%arg0: i32) -> (i32, i32) {
    %c0_i32 = arith.constant 0 : i32
    %c0_i32_0 = arith.constant 0 : i32
    %c0_i32_1 = arith.constant 0 : i32
    return %c0_i32, %c0_i32_0 : i32, i32
  }
  func.func @transform_2(%arg0: i32) -> (i32, i32) {
    %c0_i32 = arith.constant 0 : i32
    %c0_i32_0 = arith.constant 0 : i32
    %c0_i32_1 = arith.constant 0 : i32
    return %c0_i32, %c0_i32_0 : i32, i32
  }
  func.func @transform_3(%arg0: i32) -> (i32, i32) {
    %c0_i32 = arith.constant 0 : i32
    %c0_i32_0 = arith.constant 0 : i32
    %c0_i32_1 = arith.constant 0 : i32
    return %c0_i32, %c0_i32_0 : i32, i32
  }
  func.func @transform_4(%arg0: i32) -> (i32, i32) {
    %c0_i32 = arith.constant 0 : i32
    %c0_i32_0 = arith.constant 0 : i32
    %c0_i32_1 = arith.constant 0 : i32
    return %c0_i32, %c0_i32_0 : i32, i32
  }
  func.func @transform_5(%arg0: i32) -> (i32, i32) {
    %c0_i32 = arith.constant 0 : i32
    %c0_i32_0 = arith.constant 0 : i32
    return %arg0, %c0_i32 : i32, i32
  }
  func.func @transform_6(%arg0: i32) -> (i32, i32) {
    %c0_i32 = arith.constant 0 : i32
    %c0_i32_0 = arith.constant 0 : i32
    return %arg0, %c0_i32 : i32, i32
  }
}

</mosaic_0001>

<llo_original>
// kernel: tpu_custom_call.1
$region0: #{tpu_custom_call.1}
  #allocation0 [shape = 'u32[]', space=smem, size = 0x4, offset = 0x4, fixed_abs, tag = 'smem constant byte address 0x4 - core index']
  #allocation1 [shape = 'u32[144,128]{1,0:T(1,128)}', space=vmem, size = 0x12000, scoped, tag = 'internal scratch']
  #allocation2 [shape = 'f32[1,1]{1,0:T(1,128)S(1)}', space=vmem, size = 0x200, scoped, tag = 'scoped memory for tpu_custom_call.1']
  %s0 = inlined_call_operand.hbm [shape: f32[16,8,32], index: 0, kind: input, shape index: {}]
  %s1 = inlined_call_operand.hbm [shape: f32[32,32], index: 1, kind: input, shape index: {}]
  %s2 = inlined_call_operand.vmem [shape: f32[1,32], index: 2, kind: input, shape index: {}]
  %s3 = inlined_call_operand.vmem [shape: f32[1,32], index: 3, kind: input, shape index: {}]
  %s4 = inlined_call_operand.<no memory space> [shape: f32[1,1], index: 4, kind: input, shape index: {}]
  %s5 = inlined_call_operand.vmem [shape: s32[16,8], index: 5, kind: input, shape index: {}]
  %s6 = inlined_call_operand.hbm [shape: f32[16,32], index: 6, kind: output, shape index: {}]
  %s7 = sld [smem:[#allocation0]]
  $region65: #{tpu_custom_call.1} parent=0
    _
  %s9 = ssub.s32 1, %s7
  %s10 = scalar_select 0, %s9, %s7
  %v11 = vstv %s4
  %12 = vst [vmem:[#allocation2] sm:$0x1] %v11
  $region1: #{tpu_custom_call.1} parent=0
    #allocation3 [shape = 'u8[65536]{0}', space=vmem, size = 0x10000, scoped, tag = 'input window, operand 0']
    #allocation4 [shape = 's32[2]{0}', space=sflag, size = 0x8, scoped, tag = 'scoped memory for tpu_custom_call.1']
    #allocation5 [shape = 's32[2]{0}', space=sflag, size = 0x8, scoped, tag = 'scoped memory for tpu_custom_call.1']
    #allocation6 [shape = 'u8[16384]{0}', space=vmem, size = 0x4000, scoped, tag = 'input window, operand 1, single buffered']
    #allocation7 [shape = 's32[1]{0}', space=sflag, size = 0x4, scoped, tag = 'scoped memory for tpu_custom_call.1']
    #allocation8 [shape = 'u8[8192]{0}', space=vmem, size = 0x2000, scoped, tag = 'output window, operand 0']
    %13 = vsyncpa [#allocation4], 0
    %s14 = scalar_lea.sflag [#allocation4], 1
    %15 = vsyncpa %s14, 0
    %16 = vsyncpa [#allocation7], 0
    %17 = vsyncpa [#allocation5], 0
    %s18 = scalar_lea.sflag [#allocation5], 1
    %19 = vsyncpa %s18, 0
    loop: start=0, step=1, limit=4
    $region2: #{tpu_custom_call.1} parent=1 // loop_pre_header
      _
    $region3: #{tpu_custom_call.1} parent=1 // loop_header
      %s21 = sphi 0, %s25
      %p22 = scmp.ge.s32.totalorder %s21, 4
      %s31 = sphi 0, %s33
      %s34 = sphi 0, %s31
      %s35 = sphi 0, %s34
      %s51 = sphi 0, %s35
      %s55 = sphi 0, %s55
      %s57 = sphi 0, %s55
      %s58 = sphi 0, %s57
      %s72 = sphi 0, %s58
      %s76 = sphi 0, %s76
      %s78 = sphi 0, %s76
      %s79 = sphi 0, %s78
      %s93 = sphi 0, %s79
      %s97 = sphi 0, %s97
      %s99 = sphi 0, %s97
      %s100 = sphi 0, %s99
      %s114 = sphi 0, %s100
      %s118 = sphi 0, %s118
      %s120 = sphi 0, %s118
      %s121 = sphi 0, %s120
      %s135 = sphi 0, %s121
      %s141 = sphi 0, %s143
      %s144 = sphi 0, %s141
      %s145 = sphi 0, %s144
      %s161 = sphi 0, %s145
      %s167 = sphi 0, %s169
      %s170 = sphi 0, %s167
      %s171 = sphi 0, %s170
      %s187 = sphi 0, %s171
    $region4: #{tpu_custom_call.1} parent=1 // loop_header_branch
      %24 = sbr.rel (%p22) target = $region8
    $region5: #{tpu_custom_call.1} parent=1 // loop_body
      %s26 = ssub.s32 %s21, 1
      %s27 = ssub.s32 %s21, 2
      %s28 = sadd.s32 %s21, 1
      %s29 = ssub.s32 %s21, %s28
      %p30 = scmp.eq.s32.totalorder %s29, 0
      %s32 = sadd.s32 %s31, 1
      %s33 = scalar_select %p30, %s31, %s32
      %p36 = pneg %p30
      %p37 = scmp.eq.s32.totalorder %s21, 1
      %p38 = por %p36, %p37
      %p39 = scmp.ne.s32.totalorder %s31, %s34
      %p40 = scmp.eq.s32.totalorder %s21, 0
      %p41 = por %p39, %p40
      %p42 = scmp.ne.s32.totalorder %s31, %s34
      %p43 = scmp.eq.s32.totalorder %s26, 1
      %p44 = por %p42, %p43
      %p45 = scmp.ne.s32.totalorder %s34, %s35
      %p46 = scmp.eq.s32.totalorder %s26, 0
      %p47 = por %p45, %p46
      %p48 = scmp.ne.s32.totalorder %s34, %s35
      %p49 = scmp.eq.s32.totalorder %s27, 1
      %p50 = por %p48, %p49
      %p52 = scmp.ne.s32.totalorder %s35, %s51
      %p53 = scmp.eq.s32.totalorder %s27, 0
      %p54 = por %p52, %p53
      %s56 = sadd.s32 %s55, 1
      %p59 = scmp.eq.s32.totalorder %s21, 1
      %p60 = scmp.ne.s32.totalorder %s55, %s57
      %p61 = scmp.eq.s32.totalorder %s21, 0
      %p62 = por %p60, %p61
      %p63 = scmp.ne.s32.totalorder %s55, %s57
      %p64 = scmp.eq.s32.totalorder %s26, 1
      %p65 = por %p63, %p64
      %p66 = scmp.ne.s32.totalorder %s57, %s58
      %p67 = scmp.eq.s32.totalorder %s26, 0
      %p68 = por %p66, %p67
      %p69 = scmp.ne.s32.totalorder %s57, %s58
      %p70 = scmp.eq.s32.totalorder %s27, 1
      %p71 = por %p69, %p70
      %p73 = scmp.ne.s32.totalorder %s58, %s72
      %p74 = scmp.eq.s32.totalorder %s27, 0
      %p75 = por %p73, %p74
      %s77 = sadd.s32 %s76, 1
      %p80 = scmp.eq.s32.totalorder %s21, 1
      %p81 = scmp.ne.s32.totalorder %s76, %s78
      %p82 = scmp.eq.s32.totalorder %s21, 0
      %p83 = por %p81, %p82
      %p84 = scmp.ne.s32.totalorder %s76, %s78
      %p85 = scmp.eq.s32.totalorder %s26, 1
      %p86 = por %p84, %p85
      %p87 = scmp.ne.s32.totalorder %s78, %s79
      %p88 = scmp.eq.s32.totalorder %s26, 0
      %p89 = por %p87, %p88
      %p90 = scmp.ne.s32.totalorder %s78, %s79
      %p91 = scmp.eq.s32.totalorder %s27, 1
      %p92 = por %p90, %p91
      %p94 = scmp.ne.s32.totalorder %s79, %s93
      %p95 = scmp.eq.s32.totalorder %s27, 0
      %p96 = por %p94, %p95
      %s98 = sadd.s32 %s97, 1
      %p101 = scmp.eq.s32.totalorder %s21, 1
      %p102 = scmp.ne.s32.totalorder %s97, %s99
      %p103 = scmp.eq.s32.totalorder %s21, 0
      %p104 = por %p102, %p103
      %p105 = scmp.ne.s32.totalorder %s97, %s99
      %p106 = scmp.eq.s32.totalorder %s26, 1
      %p107 = por %p105, %p106
      %p108 = scmp.ne.s32.totalorder %s99, %s100
      %p109 = scmp.eq.s32.totalorder %s26, 0
      %p110 = por %p108, %p109
      %p111 = scmp.ne.s32.totalorder %s99, %s100
      %p112 = scmp.eq.s32.totalorder %s27, 1
      %p113 = por %p111, %p112
      %p115 = scmp.ne.s32.totalorder %s100, %s114
      %p116 = scmp.eq.s32.totalorder %s27, 0
      %p117 = por %p115, %p116
      %s119 = sadd.s32 %s118, 1
      %p122 = scmp.eq.s32.totalorder %s21, 1
      %p123 = scmp.ne.s32.totalorder %s118, %s120
      %p124 = scmp.eq.s32.totalorder %s21, 0
      %p125 = por %p123, %p124
      %p126 = scmp.ne.s32.totalorder %s118, %s120
      %p127 = scmp.eq.s32.totalorder %s26, 1
      %p128 = por %p126, %p127
      %p129 = scmp.ne.s32.totalorder %s120, %s121
      %p130 = scmp.eq.s32.totalorder %s26, 0
      %p131 = por %p129, %p130
      %p132 = scmp.ne.s32.totalorder %s120, %s121
      %p133 = scmp.eq.s32.totalorder %s27, 1
      %p134 = por %p132, %p133
      %p136 = scmp.ne.s32.totalorder %s121, %s135
      %p137 = scmp.eq.s32.totalorder %s27, 0
      %p138 = por %p136, %p137
      %s139 = ssub.s32 %s21, %s28
      %p140 = scmp.eq.s32.totalorder %s139, 0
      %s142 = sadd.s32 %s141, 1
      %s143 = scalar_select %p140, %s141, %s142
      %p146 = pneg %p140
      %p147 = scmp.eq.s32.totalorder %s21, 1
      %p148 = por %p146, %p147
      %p149 = scmp.ne.s32.totalorder %s141, %s144
      %p150 = scmp.eq.s32.totalorder %s21, 0
      %p151 = por %p149, %p150
      %p152 = scmp.ne.s32.totalorder %s141, %s144
      %p153 = scmp.eq.s32.totalorder %s26, 1
      %p154 = por %p152, %p153
      %p155 = scmp.ne.s32.totalorder %s144, %s145
      %p156 = scmp.eq.s32.totalorder %s26, 0
      %p157 = por %p155, %p156
      %p158 = scmp.ne.s32.totalorder %s144, %s145
      %p159 = scmp.eq.s32.totalorder %s27, 1
      %p160 = por %p158, %p159
      %p162 = scmp.ne.s32.totalorder %s145, %s161
      %p163 = scmp.eq.s32.totalorder %s27, 0
      %p164 = por %p162, %p163
      %s165 = ssub.s32 %s21, %s28
      %p166 = scmp.eq.s32.totalorder %s165, 0
      %s168 = sadd.s32 %s167, 1
      %s169 = scalar_select %p166, %s167, %s168
      %p172 = pneg %p166
      %p173 = scmp.eq.s32.totalorder %s21, 1
      %p174 = por %p172, %p173
      %p175 = scmp.ne.s32.totalorder %s167, %s170
      %p176 = scmp.eq.s32.totalorder %s21, 0
      %p177 = por %p175, %p176
      %p178 = scmp.ne.s32.totalorder %s167, %s170
      %p179 = scmp.eq.s32.totalorder %s26, 1
      %p180 = por %p178, %p179
      %p181 = scmp.ne.s32.totalorder %s170, %s171
      %p182 = scmp.eq.s32.totalorder %s26, 0
      %p183 = por %p181, %p182
      %p184 = scmp.ne.s32.totalorder %s170, %s171
      %p185 = scmp.eq.s32.totalorder %s27, 1
      %p186 = por %p184, %p185
      %p188 = scmp.ne.s32.totalorder %s171, %s187
      %p189 = scmp.eq.s32.totalorder %s27, 0
      %p190 = por %p188, %p189
      %p191 = scmp.le.s32.totalorder 1, %s21
      %p192 = scmp.lt.s32.totalorder %s21, 3
      %p193 = pnand %p191, %p192
      %p194 = pneg %p193
      // Predicated region
      $region9: #{tpu_custom_call.1} parent=5 // pred_check
        _
      $region10: #{tpu_custom_call.1} parent=5 // pred_check_branch
        %196 = sbr.rel (%p193) target = $region12
      $region11: #{tpu_custom_call.1} parent=5 // pred_region
        %s197 = ssub.s32 %s21, 1
        // Predicated region
        $region13: #{tpu_custom_call.1} parent=11 // pred_check
          %p198 = pneg %p68
        $region14: #{tpu_custom_call.1} parent=11 // pred_check_branch
          %200 = sbr.rel (%p198) target = $region16
        $region15: #{tpu_custom_call.1} parent=11 // pred_region
          %s202 = ssub.s32 512, 512
          %203 = vsyncadd [#allocation7], %s202
          %s204 = sshll.u32 [#allocation6], 4
          %s205 = int_to_ptr.vmem [resolvable:$true] %s204
          %210 = dma.hbm_to_vmem [thread:$0]  %s1, 512, %s205, [#allocation7], 128, 128, 8
        $region16: #{tpu_custom_call.1} parent=11 // pred_fallthru
          _
        // Predicated region
        $region17: #{tpu_custom_call.1} parent=11 // pred_check
          %p211 = pneg %p89
        $region18: #{tpu_custom_call.1} parent=11 // pred_check_branch
          %213 = sbr.rel (%p211) target = $region20
        $region19: #{tpu_custom_call.1} parent=11 // pred_region
          _
        $region20: #{tpu_custom_call.1} parent=11 // pred_fallthru
          _
        // Predicated region
        $region21: #{tpu_custom_call.1} parent=11 // pred_check
          %p214 = pneg %p110
        $region22: #{tpu_custom_call.1} parent=11 // pred_check_branch
          %216 = sbr.rel (%p214) target = $region24
        $region23: #{tpu_custom_call.1} parent=11 // pred_region
          _
        $region24: #{tpu_custom_call.1} parent=11 // pred_fallthru
          _
        // Predicated region
        $region25: #{tpu_custom_call.1} parent=11 // pred_check
          %p217 = pneg %p131
        $region26: #{tpu_custom_call.1} parent=11 // pred_check_branch
          %219 = sbr.rel (%p217) target = $region28
        $region27: #{tpu_custom_call.1} parent=11 // pred_region
          _
        $region28: #{tpu_custom_call.1} parent=11 // pred_fallthru
          _
      $region12: #{tpu_custom_call.1} parent=5 // pred_fallthru
        _
      %p220 = scmp.lt.s32.totalorder %s21, 2
      // Predicated region
      $region29: #{tpu_custom_call.1} parent=5 // pred_check
        %p221 = pneg %p220
      $region30: #{tpu_custom_call.1} parent=5 // pred_check_branch
        %223 = sbr.rel (%p221) target = $region32
      $region31: #{tpu_custom_call.1} parent=5 // pred_region
        // Predicated region
        $region33: #{tpu_custom_call.1} parent=31 // pred_check
          %p224 = pneg %p41
        $region34: #{tpu_custom_call.1} parent=31 // pred_check_branch
          %226 = sbr.rel (%p224) target = $region36
        $region35: #{tpu_custom_call.1} parent=31 // pred_region
          %s227 = sand.u32 %s31, 1
          %s228 = scalar_lea.sflag [#allocation4], %s227
          %s229 = sand.u32 %s31, 1
          %s230 = smul.addr %s229, 64
          %s231 = scalar_lea.vmem [#allocation3], %s230
          %s232 = smul.u32 8, %s21
          %s234 = ssub.s32 1024, 1024
          %235 = vsyncadd %s228, %s234
          %s236 = smul.addr %s232, 128
          %s237 = scalar_lea.hbm %s0, %s236
          %s238 = sshll.u32 %s231, 4
          %s239 = int_to_ptr.vmem [resolvable:$true] %s238
          %244 = dma.hbm_to_vmem [thread:$0]  %s237, 1024, %s239, %s228, 128, 128, 8
        $region36: #{tpu_custom_call.1} parent=31 // pred_fallthru
          _
        // Predicated region
        $region37: #{tpu_custom_call.1} parent=31 // pred_check
          %p245 = pneg %p151
        $region38: #{tpu_custom_call.1} parent=31 // pred_check_branch
          %247 = sbr.rel (%p245) target = $region40
        $region39: #{tpu_custom_call.1} parent=31 // pred_region
          %p248 = scmp.lt.s32.totalorder %s21, 1
          %s249 = scalar_select %p248, %s21, 1
          %s250 = smul.addr %s249, 8
          %s251 = scalar_lea.vmem %s5, %s250
        $region40: #{tpu_custom_call.1} parent=31 // pred_fallthru
          _
      $region32: #{tpu_custom_call.1} parent=5 // pred_fallthru
        _
      %p252 = scmp.le.s32.totalorder 1, %s21
      %p253 = scmp.lt.s32.totalorder %s21, 3
      %p254 = pnand %p252, %p253
      %p255 = pneg %p254
      // Predicated region
      $region41: #{tpu_custom_call.1} parent=5 // pred_check
        _
      $region42: #{tpu_custom_call.1} parent=5 // pred_check_branch
        %257 = sbr.rel (%p254) target = $region44
      $region43: #{tpu_custom_call.1} parent=5 // pred_region
        %s258 = ssub.s32 %s21, 1
        %s259 = sand.u32 %s34, 1
        %s260 = scalar_lea.sflag [#allocation4], %s259
        %s261 = sand.u32 %s34, 1
        %s262 = smul.addr %s261, 64
        %s263 = scalar_lea.vmem [#allocation3], %s262
        // Predicated region
        $region45: #{tpu_custom_call.1} parent=43 // pred_check
          %p264 = pneg %p47
        $region46: #{tpu_custom_call.1} parent=43 // pred_check_branch
          %266 = sbr.rel (%p264) target = $region48
        $region47: #{tpu_custom_call.1} parent=43 // pred_region
          %267 = dma.done %s260, 1024
        $region48: #{tpu_custom_call.1} parent=43 // pred_fallthru
          _
        // Predicated region
        $region49: #{tpu_custom_call.1} parent=43 // pred_check
          %p268 = pneg %p68
        $region50: #{tpu_custom_call.1} parent=43 // pred_check_branch
          %270 = sbr.rel (%p268) target = $region52
        $region51: #{tpu_custom_call.1} parent=43 // pred_region
          %271 = dma.done [#allocation7], 512
        $region52: #{tpu_custom_call.1} parent=43 // pred_fallthru
          _
        %s272 = sand.u32 %s34, 1
        %s273 = scalar_lea.sflag [#allocation4], %s272
        %s274 = sand.u32 %s34, 1
        %s275 = smul.addr %s274, 64
        %s276 = scalar_lea.vmem [#allocation3], %s275
        %p277 = pneg %p47
        %p278 = pneg %p44
        %p279 = pneg %p68
        %p280 = pneg %p65
        %p281 = pneg %p89
        %p282 = pneg %p86
        %p283 = pneg %p110
        %p284 = pneg %p107
        %p285 = pneg %p131
        %p286 = pneg %p128
        %p287 = scmp.lt.s32.totalorder %s26, 1
        %s288 = scalar_select %p287, %s26, 1
        %s289 = smul.addr %s288, 8
        %s290 = scalar_lea.vmem %s5, %s289
        %p291 = pneg %p157
        %p292 = pneg %p154
        %p293 = pneg %p183
        %p294 = pneg %p180
        %s295 = sand.u32 %s170, 1
        %s296 = scalar_lea.sflag [#allocation5], %s295
        %s297 = sand.u32 %s170, 1
        %s298 = smul.addr %s297, 8
        %s299 = scalar_lea.vmem [#allocation8], %s298
        %s300 = smul.u32 8, %s26
        %p301 = scmp.lt.s32.totalorder %s26, 1
        %s302 = scalar_select %p301, %s26, 1
        %s303 = smul.addr %s302, 8
        %s304 = scalar_lea.vmem %s5, %s303
        %v305 = vld [vmem:[%s263] sm:$0xff]
        %v306 = vld [vmem:[%s263 + $0x8] sm:$0xff]
        %v307 = vld [vmem:[%s263 + $0x10] sm:$0xff]
        %v308 = vld [vmem:[%s263 + $0x18] sm:$0xff]
        %v309 = vld [vmem:[%s263 + $0x20] sm:$0xff]
        %v310 = vld [vmem:[%s263 + $0x28] sm:$0xff]
        %v311 = vld [vmem:[%s263 + $0x30] sm:$0xff]
        %v312 = vld [vmem:[%s263 + $0x38] sm:$0xff]
        %v313 = vld [vmem:[#allocation6] sm:$0xff]
        %v314 = vld [vmem:[#allocation6 + $0x8] sm:$0xff]
        %v315 = vld [vmem:[#allocation6 + $0x10] sm:$0xff]
        %v316 = vld [vmem:[#allocation6 + $0x18] sm:$0xff]
        %v317 = vld [vmem:[%s2] sm:$0x1]
        %v319 = vlaneseq
        %v320 = vshrl.u32 %v319, 7
        %v321 = vsub.s32 0, %v320
        %v322 = vrot.slane %v317, %v321
        %vm324 = vcmask 261120
        %v326 = vsel %vm324, %v305, 0
        %v329 = vsel %vm324, %v306, 0
        %v332 = vsel %vm324, %v307, 0
        %v335 = vsel %vm324, %v308, 0
        %v338 = vsel %vm324, %v309, 0
        %v341 = vsel %vm324, %v310, 0
        %v344 = vsel %vm324, %v311, 0
        %v347 = vsel %vm324, %v312, 0
        %349 = vmatprep.subr.mxu0 0.0
        %350 = vmatpush1.msra.mxu0 0.0
        %351 = vmatprep.subr.mxu0 0.0
        %352 = vmatpush1.msra.mxu0 0.0
        %353 = vmatprep.subr.mxu0 0.0
        %354 = vmatpush1.msra.mxu0 0.0
        %355 = vmatprep.subr.mxu0 0.0
        %356 = vmatpush1.msra.mxu0 0.0
        %357 = vmatprep.subr.mxu0 0.0
        %358 = vmatpush1.msra.mxu0 0.0
        %359 = vmatprep.subr.mxu0 0.0
        %360 = vmatpush1.msra.mxu0 0.0
        %361 = vmatprep.subr.mxu0 0.0
        %362 = vmatpush1.msra.mxu0 0.0
        %363 = vmatprep.subr.mxu0 0.0
        %364 = vmatpush1.msra.mxu0 0.0
        %365 = vmatprep.subr.mxu0 0.0
        %366 = vmatpush1.msra.mxu0 0.0
        %367 = vmatprep.subr.mxu0 0.0
        %368 = vmatpush1.msra.mxu0 0.0
        %369 = vmatprep.subr.mxu0 0.0
        %370 = vmatpush1.msra.mxu0 0.0
        %371 = vmatprep.subr.mxu0 0.0
        %372 = vmatpush1.msra.mxu0 0.0
        %373 = vmatprep.subr.mxu0 0.0
        %374 = vmatpush1.msra.mxu0 %v316
        %375 = vmatprep.subr.mxu0 0.0
        %376 = vmatpush1.msra.mxu0 %v315
        %377 = vmatprep.subr.mxu0 0.0
        %378 = vmatpush1.msra.mxu0 %v314
        %379 = vmatprep.subr.mxu0 0.0
        %380 = vmatpush1.msra.mxu0 %v313
        %381 = vmatprep.subr.mxu0 0.0
        %382 = vmatpush2.msra.mxu0 0.0
        %383 = vmatprep.subr.mxu0 0.0
        %384 = vmatpush2.msra.mxu0 0.0
        %385 = vmatprep.subr.mxu0 0.0
        %386 = vmatpush2.msra.mxu0 0.0
        %387 = vmatprep.subr.mxu0 0.0
        %388 = vmatpush2.msra.mxu0 0.0
        %389 = vmatprep.subr.mxu0 0.0
        %390 = vmatpush2.msra.mxu0 0.0
        %391 = vmatprep.subr.mxu0 0.0
        %392 = vmatpush2.msra.mxu0 0.0
        %393 = vmatprep.subr.mxu0 0.0
        %394 = vmatpush2.msra.mxu0 0.0
        %395 = vmatprep.subr.mxu0 0.0
        %396 = vmatpush2.msra.mxu0 0.0
        %397 = vmatprep.subr.mxu0 0.0
        %398 = vmatpush2.msra.mxu0 0.0
        %399 = vmatprep.subr.mxu0 0.0
        %400 = vmatpush2.msra.mxu0 0.0
        %401 = vmatprep.subr.mxu0 0.0
        %402 = vmatpush2.msra.mxu0 0.0
        %403 = vmatprep.subr.mxu0 0.0
        %404 = vmatpush2.msra.mxu0 0.0
        %405 = vmatprep.subr.mxu0 0.0
        %406 = vmatpush2.msra.mxu0 0.0
        %407 = vmatprep.subr.mxu0 0.0
        %408 = vmatpush2.msra.mxu0 0.0
        %409 = vmatprep.subr.mxu0 0.0
        %410 = vmatpush2.msra.mxu0 0.0
        %411 = vmatprep.subr.mxu0 0.0
        %412 = vmatpush2.msra.mxu0 0.0
        %413 = vmatprep.mubr.f32.mxu0 0.0
        %414 = vmatmul.mubr.f32.gmra.mxu0 %v326
        %v415 = vpop.f32.mrf.mxu0
        %v416 = vadd.f32 %v322, %v415
        %v417 = vpop.f32.mrf.mxu0
        %418 = vmatprep.mubr.f32.mxu0 0.0
        %419 = vmatmul.mubr.f32.gmra.mxu0 %v329
        %v420 = vpop.f32.mrf.mxu0
        %v421 = vadd.f32 %v322, %v420
        %v422 = vpop.f32.mrf.mxu0
        %423 = vmatprep.mubr.f32.mxu0 0.0
        %424 = vmatmul.mubr.f32.gmra.mxu0 %v332
        %v425 = vpop.f32.mrf.mxu0
        %v426 = vadd.f32 %v322, %v425
        %v427 = vpop.f32.mrf.mxu0
        %428 = vmatprep.mubr.f32.mxu0 0.0
        %429 = vmatmul.mubr.f32.gmra.mxu0 %v335
        %v430 = vpop.f32.mrf.mxu0
        %v431 = vadd.f32 %v322, %v430
        %v432 = vpop.f32.mrf.mxu0
        %433 = vmatprep.mubr.f32.mxu0 0.0
        %434 = vmatmul.mubr.f32.gmra.mxu0 %v338
        %v435 = vpop.f32.mrf.mxu0
        %v436 = vadd.f32 %v322, %v435
        %v437 = vpop.f32.mrf.mxu0
        %438 = vmatprep.mubr.f32.mxu0 0.0
        %439 = vmatmul.mubr.f32.gmra.mxu0 %v341
        %v440 = vpop.f32.mrf.mxu0
        %v441 = vadd.f32 %v322, %v440
        %v442 = vpop.f32.mrf.mxu0
        %443 = vmatprep.mubr.f32.mxu0 0.0
        %444 = vmatmul.mubr.f32.gmra.mxu0 %v344
        %v445 = vpop.f32.mrf.mxu0
        %v446 = vadd.f32 %v322, %v445
        %v447 = vpop.f32.mrf.mxu0
        %448 = vmatprep.mubr.f32.mxu0 0.0
        %449 = vmatmul.mubr.f32.gmra.mxu0 %v347
        %v450 = vpop.f32.mrf.mxu0
        %v451 = vadd.f32 %v322, %v450
        %v452 = vpop.f32.mrf.mxu0
        %453 = vdwg.mxu0
        %v454 = vtanh.pop %v416
        %v455 = vtanh.pop %v421
        %v456 = vtanh.pop %v426
        %v457 = vtanh.pop %v431
        %v458 = vtanh.pop %v436
        %v459 = vtanh.pop %v441
        %v460 = vtanh.pop %v446
        %v461 = vtanh.pop %v451
        %v462 = vld [vmem:[%s3] sm:$0x1]
        %v464 = vlaneseq
        %v465 = vshrl.u32 %v464, 7
        %v466 = vsub.s32 0, %v465
        %v467 = vrot.slane %v462, %v466
        %v469 = vmul.f32 %v454, %v467
        %v470 = vmul.f32 %v455, %v467
        %v471 = vmul.f32 %v456, %v467
        %v472 = vmul.f32 %v457, %v467
        %v473 = vmul.f32 %v458, %v467
        %v474 = vmul.f32 %v459, %v467
        %v475 = vmul.f32 %v460, %v467
        %v476 = vmul.f32 %v461, %v467
        %v477 = vsel %vm324, %v469, 0.0
        %478 = vadd.xlane.f32.xlu0 %v477
        %v479 = vpop.xlane.xlu0 %478
        %v480 = vsel %vm324, %v470, 0.0
        %481 = vadd.xlane.f32.xlu0 %v480
        %v482 = vpop.xlane.xlu0 %481
        %v483 = vsel %vm324, %v471, 0.0
        %484 = vadd.xlane.f32.xlu0 %v483
        %v485 = vpop.xlane.xlu0 %484
        %v486 = vsel %vm324, %v472, 0.0
        %487 = vadd.xlane.f32.xlu0 %v486
        %v488 = vpop.xlane.xlu0 %487
        %v489 = vsel %vm324, %v473, 0.0
        %490 = vadd.xlane.f32.xlu0 %v489
        %v491 = vpop.xlane.xlu0 %490
        %v492 = vsel %vm324, %v474, 0.0
        %493 = vadd.xlane.f32.xlu0 %v492
        %v494 = vpop.xlane.xlu0 %493
        %v495 = vsel %vm324, %v475, 0.0
        %496 = vadd.xlane.f32.xlu0 %v495
        %v497 = vpop.xlane.xlu0 %496
        %v498 = vsel %vm324, %v476, 0.0
        %499 = vadd.xlane.f32.xlu0 %v498
        %v500 = vpop.xlane.xlu0 %499
        %v501 = vld [vmem:[#allocation2] sm:$0x1]
        %v503 = vlaneseq
        %v504 = vshrl.u32 %v503, 7
        %v505 = vsub.s32 0, %v504
        %v506 = vrot.slane %v501, %v505
        %507 = vset.pattern.permute.xlu0 0
        %508 = vperm.xlu0 %507, %v506
        %v509 = vpop.permute.xlu0 %508
        %v511 = vadd.f32 %v479, %v509
        %v512 = vadd.f32 %v482, %v509
        %v513 = vadd.f32 %v485, %v509
        %v514 = vadd.f32 %v488, %v509
        %v515 = vadd.f32 %v491, %v509
        %v516 = vadd.f32 %v494, %v509
        %v517 = vadd.f32 %v497, %v509
        %v518 = vadd.f32 %v500, %v509
        %v519 = vld [vmem:[%s304] sm:$0xff]
        %vm520 = vcmp.eq.s32.totalorder %v519, 0
        %v529 = vlaneseq
        %v530 = vand.u32 %v529, 127
        %v531 = vlaneseq
        %v532 = vshrl.u32 %v531, 7
        %v533 = vsub.s32 %v530, %v532
        %v534 = vrot.slane %v511, %v533
        %v535 = vlaneseq
        %v536 = vshrl.u32 %v535, 7
        %v537 = vsub.s32 %v530, %v536
        %v538 = vrot.slane %v512, %v537
        %v539 = vlaneseq
        %v540 = vshrl.u32 %v539, 7
        %v541 = vsub.s32 %v530, %v540
        %v542 = vrot.slane %v513, %v541
        %v543 = vlaneseq
        %v544 = vshrl.u32 %v543, 7
        %v545 = vsub.s32 %v530, %v544
        %v546 = vrot.slane %v514, %v545
        %v547 = vlaneseq
        %v548 = vshrl.u32 %v547, 7
        %v549 = vsub.s32 %v530, %v548
        %v550 = vrot.slane %v515, %v549
        %v551 = vlaneseq
        %v552 = vshrl.u32 %v551, 7
        %v553 = vsub.s32 %v530, %v552
        %v554 = vrot.slane %v516, %v553
        %v555 = vlaneseq
        %v556 = vshrl.u32 %v555, 7
        %v557 = vsub.s32 %v530, %v556
        %v558 = vrot.slane %v517, %v557
        %v559 = vlaneseq
        %v560 = vshrl.u32 %v559, 7
        %v561 = vsub.s32 %v530, %v560
        %v562 = vrot.slane %v518, %v561
        %vm563 = vcmask 1041409
        %v564 = vsel %vm563, %v538, %v534
        %vm565 = vcmask 1042434
        %v566 = vsel %vm565, %v542, %v564
        %vm567 = vcmask 1043459
        %v568 = vsel %vm567, %v546, %v566
        %vm569 = vcmask 1044484
        %v570 = vsel %vm569, %v550, %v568
        %vm571 = vcmask 1045509
        %v572 = vsel %vm571, %v554, %v570
        %vm573 = vcmask 1046534
        %v574 = vsel %vm573, %v558, %v572
        %vm575 = vcmask 1047559
        %v576 = vsel %vm575, %v562, %v574
        %v578 = vsel %vm520, -1e+09, %v576
        %vm579 = vcmask 64512
        %v580 = vsel %vm579, %v578, -inf
        %581 = vmax.xlane.f32.xlu0 %v580
        %v582 = vpop.xlane.xlu0 %581
        %v583 = vsub.f32 %v578, %v582
        %v584 = vmul.f32 %v583, 1.442695
        %v585 = vpow.pop %v584
        %v586 = vsel %vm579, %v585, 0.0
        %587 = vadd.xlane.f32.xlu0 %v586
        %v588 = vpop.xlane.xlu0 %587
        %v589 = vrcp.pop %v588
        %v590 = vmul.f32 %v585, %v589
        %v591 = vlaneseq
        %v592 = vshrl.u32 %v591, 7
        %v593 = vsub.s32 0, %v592
        %v594 = vrot.slane %v590, %v593
        %596 = vbcast.lane.b32.xlu0 %v594, 256
        %v597 = vpop.permute.xlu0 %596
        %v598 = vlaneseq
        %v599 = vshrl.u32 %v598, 7
        %v600 = vsub.s32 1, %v599
        %v601 = vrot.slane %v590, %v600
        %603 = vbcast.lane.b32.xlu0 %v601, 256
        %v604 = vpop.permute.xlu0 %603
        %v605 = vlaneseq
        %v606 = vshrl.u32 %v605, 7
        %v607 = vsub.s32 2, %v606
        %v608 = vrot.slane %v590, %v607
        %610 = vbcast.lane.b32.xlu0 %v608, 256
        %v611 = vpop.permute.xlu0 %610
        %v612 = vlaneseq
        %v613 = vshrl.u32 %v612, 7
        %v614 = vsub.s32 3, %v613
        %v615 = vrot.slane %v590, %v614
        %617 = vbcast.lane.b32.xlu0 %v615, 256
        %v618 = vpop.permute.xlu0 %617
        %v619 = vlaneseq
        %v620 = vshrl.u32 %v619, 7
        %v621 = vsub.s32 4, %v620
        %v622 = vrot.slane %v590, %v621
        %624 = vbcast.lane.b32.xlu0 %v622, 256
        %v625 = vpop.permute.xlu0 %624
        %v626 = vlaneseq
        %v627 = vshrl.u32 %v626, 7
        %v628 = vsub.s32 5, %v627
        %v629 = vrot.slane %v590, %v628
        %631 = vbcast.lane.b32.xlu0 %v629, 256
        %v632 = vpop.permute.xlu0 %631
        %v633 = vlaneseq
        %v634 = vshrl.u32 %v633, 7
        %v635 = vsub.s32 6, %v634
        %v636 = vrot.slane %v590, %v635
        %638 = vbcast.lane.b32.xlu0 %v636, 256
        %v639 = vpop.permute.xlu0 %638
        %v640 = vlaneseq
        %v641 = vshrl.u32 %v640, 7
        %v642 = vsub.s32 7, %v641
        %v643 = vrot.slane %v590, %v642
        %645 = vbcast.lane.b32.xlu0 %v643, 256
        %v646 = vpop.permute.xlu0 %645
        %v647 = vmul.f32 %v305, %v597
        %v648 = vmul.f32 %v306, %v604
        %v649 = vmul.f32 %v307, %v611
        %v650 = vmul.f32 %v308, %v618
        %v651 = vmul.f32 %v309, %v625
        %v652 = vmul.f32 %v310, %v632
        %v653 = vmul.f32 %v311, %v639
        %v654 = vmul.f32 %v312, %v646
        %v655 = vsel %vm324, %v647, 0.0
        %v656 = vrot.slane %v655, 4
        %v657 = vadd.f32 %v655, %v656
        %v658 = vrot.slane %v657, 2
        %v659 = vadd.f32 %v657, %v658
        %v660 = vrot.slane %v659, 1
        %v661 = vadd.f32 %v659, %v660
        %v662 = vsel %vm324, %v648, 0.0
        %v663 = vrot.slane %v662, 4
        %v664 = vadd.f32 %v662, %v663
        %v665 = vrot.slane %v664, 2
        %v666 = vadd.f32 %v664, %v665
        %v667 = vrot.slane %v666, 1
        %v668 = vadd.f32 %v666, %v667
        %v669 = vsel %vm324, %v649, 0.0
        %v670 = vrot.slane %v669, 4
        %v671 = vadd.f32 %v669, %v670
        %v672 = vrot.slane %v671, 2
        %v673 = vadd.f32 %v671, %v672
        %v674 = vrot.slane %v673, 1
        %v675 = vadd.f32 %v673, %v674
        %v676 = vsel %vm324, %v650, 0.0
        %v677 = vrot.slane %v676, 4
        %v678 = vadd.f32 %v676, %v677
        %v679 = vrot.slane %v678, 2
        %v680 = vadd.f32 %v678, %v679
        %v681 = vrot.slane %v680, 1
        %v682 = vadd.f32 %v680, %v681
        %v683 = vsel %vm324, %v651, 0.0
        %v684 = vrot.slane %v683, 4
        %v685 = vadd.f32 %v683, %v684
        %v686 = vrot.slane %v685, 2
        %v687 = vadd.f32 %v685, %v686
        %v688 = vrot.slane %v687, 1
        %v689 = vadd.f32 %v687, %v688
        %v690 = vsel %vm324, %v652, 0.0
        %v691 = vrot.slane %v690, 4
        %v692 = vadd.f32 %v690, %v691
        %v693 = vrot.slane %v692, 2
        %v694 = vadd.f32 %v692, %v693
        %v695 = vrot.slane %v694, 1
        %v696 = vadd.f32 %v694, %v695
        %v697 = vsel %vm324, %v653, 0.0
        %v698 = vrot.slane %v697, 4
        %v699 = vadd.f32 %v697, %v698
        %v700 = vrot.slane %v699, 2
        %v701 = vadd.f32 %v699, %v700
        %v702 = vrot.slane %v701, 1
        %v703 = vadd.f32 %v701, %v702
        %v704 = vsel %vm324, %v654, 0.0
        %v705 = vrot.slane %v704, 4
        %v706 = vadd.f32 %v704, %v705
        %v707 = vrot.slane %v706, 2
        %v708 = vadd.f32 %v706, %v707
        %v709 = vrot.slane %v708, 1
        %v710 = vadd.f32 %v708, %v709
        %v719 = vsel %vm563, %v668, %v661
        %v720 = vsel %vm565, %v675, %v719
        %v721 = vsel %vm567, %v682, %v720
        %v722 = vsel %vm569, %v689, %v721
        %v723 = vsel %vm571, %v696, %v722
        %v724 = vsel %vm573, %v703, %v723
        %v725 = vsel %vm575, %v710, %v724
        %727 = vst.msk [vmem:[%s299] sm:$0xff] %vm324, %v725
        %s728 = sand.u32 %s170, 1
        %s729 = scalar_lea.sflag [#allocation5], %s728
        %s730 = sand.u32 %s170, 1
        %s731 = smul.addr %s730, 8
        %s732 = scalar_lea.vmem [#allocation8], %s731
        // Predicated region
        $region53: #{tpu_custom_call.1} parent=43 // pred_check
          %p733 = pneg %p180
        $region54: #{tpu_custom_call.1} parent=43 // pred_check_branch
          %735 = sbr.rel (%p733) target = $region56
        $region55: #{tpu_custom_call.1} parent=43 // pred_region
          %s737 = ssub.s32 128, 128
          %738 = vsyncadd %s729, %s737
          %s739 = smul.addr %s26, 128
          %s740 = scalar_lea.hbm %s6, %s739
          %s742 = sshll.u32 %s732, 4
          %s743 = int_to_ptr.vmem [resolvable:$true] %s742
          %745 = dma.vmem_to_hbm [thread:$0]  %s743, 128, %s740, %s729
        $region56: #{tpu_custom_call.1} parent=43 // pred_fallthru
          _
      $region44: #{tpu_custom_call.1} parent=5 // pred_fallthru
        _
      %p746 = scmp.le.s32.totalorder 2, %s21
      // Predicated region
      $region57: #{tpu_custom_call.1} parent=5 // pred_check
        %p747 = pneg %p746
      $region58: #{tpu_custom_call.1} parent=5 // pred_check_branch
        %749 = sbr.rel (%p747) target = $region60
      $region59: #{tpu_custom_call.1} parent=5 // pred_region
        %s750 = ssub.s32 %s21, 2
        // Predicated region
        $region61: #{tpu_custom_call.1} parent=59 // pred_check
          %p751 = pneg %p186
        $region62: #{tpu_custom_call.1} parent=59 // pred_check_branch
          %753 = sbr.rel (%p751) target = $region64
        $region63: #{tpu_custom_call.1} parent=59 // pred_region
          %s754 = sand.u32 %s171, 1
          %s755 = scalar_lea.sflag [#allocation5], %s754
          %s756 = sand.u32 %s171, 1
          %s757 = smul.addr %s756, 8
          %s758 = scalar_lea.vmem [#allocation8], %s757
          %759 = dma.done %s755, 128
        $region64: #{tpu_custom_call.1} parent=59 // pred_fallthru
          _
      $region60: #{tpu_custom_call.1} parent=5 // pred_fallthru
        _
    $region6: #{tpu_custom_call.1} parent=1 // loop_footer
      %s25 = sadd.s32 1, %s21
    $region7: #{tpu_custom_call.1} parent=1 // loop_footer_branch
      %20 = sbr.rel target = $region3
    $region8: #{tpu_custom_call.1} parent=1 // loop_exit
      _
    %760 = vsyncpa [#allocation4], 1
    %s761 = scalar_lea.sflag [#allocation4], 1
    %762 = vsyncpa %s761, 1
    %763 = vsyncpa [#allocation7], 1
    %764 = vsyncpa [#allocation5], 1
    %s765 = scalar_lea.sflag [#allocation5], 1
    %766 = vsyncpa %s765, 1

</llo_original>
